<compile_context>
chip_gen: v5e
topology: v5e:2x2
jax: 0.10.0
libtpu: 0.0.40
codegen_flags: <defaults>
</compile_context>

<pallas_src>
import functools

import jax
import jax.numpy as jnp
from jax.experimental import pallas as pl
from jax.experimental.pallas import tpu as pltpu


def _round_up(x, m):
    return (x + m - 1) // m * m


def _dropout(x, p):
    """PyTorch-style dropout. Caller must have seeded the TPU PRNG."""
    if p <= 0.0:
        return x
    if p >= 1.0:                               # PyTorch returns zeros, not NaN
        return jnp.zeros_like(x)
    bits = pltpu.bitcast(pltpu.prng_random_bits(x.shape), jnp.uint32)
    # keep iff top-24 random bits >= p * 2^24 (probability 1 - p); integer
    # threshold compare, no int->float convert.
    bits24 = (bits >> jnp.uint32(8)).astype(jnp.int32)
    thresh = jnp.int32(int(round(p * (1 << 24))))
    keep = (bits24 >= thresh).astype(x.dtype)
    return x * keep * (1.0 / (1.0 - p))


# ---------------------------------------------------------------------------
# index path: unrolled, grouped, lane-dense embedding gather
# ---------------------------------------------------------------------------
def _embed_gather_kernel(ids_ref, seed_ref, w_ref, o_ref, *,
                         rows_per_step, pack, vocab, p, training):
    step = pl.program_id(0)
    row_base = step * rows_per_step            # output rows handled this step
    GROUP = 8                                  # sublanes per grouped store
    n_groups = rows_per_step // GROUP

    def gather_row(tok):
        # one packed output row: `pack` embedding rows concatenated on lanes
        parts = []
        for q in range(pack):
            idx = ids_ref[tok + q]
            idx = jnp.minimum(jnp.maximum(idx, 0), vocab - 1)   # clamp OOB ids
            parts.append(w_ref[pl.ds(idx, 1), :])
        return parts[0] if pack == 1 else jnp.concatenate(parts, axis=1)

    def group_body(g, carry):
        r0 = pl.multiple_of(g * GROUP, GROUP)                   # aligned offset
        tok0 = (row_base + r0) * pack
        rows = [gather_row(tok0 + s * pack) for s in range(GROUP)]
        o_ref[pl.ds(r0, GROUP), :] = jnp.concatenate(rows, axis=0)
        return carry

    jax.lax.fori_loop(0, n_groups, group_body, 0, unroll=True)

    if training and p > 0.0:                   # statically elided in eval
        pltpu.prng_seed(seed_ref[0] + step)
        o_ref[...] = _dropout(o_ref[...], p)


# ---------------------------------------------------------------------------
# onehot path: K-tiled MXU matmul accumulating into the resident output block
# ---------------------------------------------------------------------------
def _onehot_matmul_kernel(seed_ref, x_ref, w_ref, o_ref, *, p, training):
    k = pl.program_id(1)

    @pl.when(k == 0)
    def _():
        o_ref[...] = jnp.zeros_like(o_ref)

    # bf16 one-hot values are exact; upcast on the VPU, accumulate f32 on MXU.
    o_ref[...] += jnp.dot(x_ref[...].astype(jnp.float32), w_ref[...],
                          preferred_element_type=jnp.float32)

    if training and p > 0.0:                   # statically elided in eval
        @pl.when(k == pl.num_programs(1) - 1)
        def _():
            pltpu.prng_seed(seed_ref[0] + pl.program_id(0))
            o_ref[...] = _dropout(o_ref[...], p)


class NetW:
    """JAX/Pallas port of _netW. word_embed.weight is shared with the Linear."""

    TOKENS_PER_STEP = 256        # index path: max tokens gathered per grid step
    TM = 512                     # onehot path: M tile (capped to actual rows)
    VMEM_TABLE_LIMIT = 40 << 20  # beyond this the table can't live in VMEM (v7x)
    ONEHOT_IN_BF16 = True        # 0/1 one-hot is exact in bf16; flip for soft x

    def __init__(self, ntoken, ninp, dropout, key):
        self.V = ntoken + 1
        self.D = ninp
        self.d = float(dropout)
        initrange = 0.1
        # matches word_embed.weight.data.uniform_(-0.1, 0.1)
        self.weight = jax.random.uniform(
            key, (self.V, self.D), jnp.float32, -initrange, initrange)

    # ------------------------------------------------------------------ index
    def _forward_index(self, inp, training, seed):
        B, S = inp.shape
        D, V = self.D, self.V
        ids = inp.reshape(-1).astype(jnp.int32)
        N = ids.shape[0]

        table_bytes = V * D * 4
        if table_bytes > self.VMEM_TABLE_LIMIT:
            # TODO(synk): manual double-buffered DMA row-group gather
            # (memory_space=pl.ANY + make_async_copy) for tables that exceed
            # the per-TC VMEM budget on v7x.
            out = jnp.take(self.weight, ids, axis=0)
            out = self._host_dropout(out, training, seed)
            return out.reshape(B, S, D)

        # lane-dense packing: pack 128//D tokens per output row when D < 128
        pack = 128 // D if (D < 128 and 128 % D == 0) else 1
        tps = min(self.TOKENS_PER_STEP, _round_up(max(N, 1), 8 * pack))
        n_pad = _round_up(max(N, 1), tps)
        if n_pad != N:
            ids = jnp.pad(ids, (0, n_pad - N))       # pad with id 0 (valid row)
        rows_per_step = tps // pack
        n_rows = n_pad // pack
        seed_arr = jnp.asarray([seed], dtype=jnp.int32)

        out_tile_bytes = rows_per_step * pack * D * 4
        vmem_limit = int(max(32 << 20, min(
            100 << 20, 2 * table_bytes + 2 * out_tile_bytes + (2 << 20))))

        kernel = functools.partial(
            _embed_gather_kernel, rows_per_step=rows_per_step, pack=pack,
            vocab=V, p=self.d, training=training)

        def run(table_mode):
            table_idx = lambda i, ids_r, seed_r: (0, 0)
            if table_mode is None:
                table_spec = pl.BlockSpec((V, D), table_idx)
            else:
                # constant-index resident table: single-buffer it (halves its
                # VMEM footprint for free — important on v7x's 64 MiB/TC).
                table_spec = pl.BlockSpec((V, D), table_idx,
                                          pipeline_mode=table_mode)
            return pl.pallas_call(
                kernel,
                out_shape=jax.ShapeDtypeStruct((n_rows, pack * D), jnp.float32),
                grid_spec=pltpu.PrefetchScalarGridSpec(
                    num_scalar_prefetch=2,               # ids, seed -> SMEM
                    grid=(n_pad // tps,),
                    in_specs=[table_spec],
                    out_specs=pl.BlockSpec(
                        (rows_per_step, pack * D),
                        lambda i, ids_r, seed_r: (i, 0)),
                ),
                compiler_params=pltpu.CompilerParams(
                    dimension_semantics=("parallel",),
                    vmem_limit_bytes=vmem_limit),
            )(ids, seed_arr, self.weight)

        try:
            out = run(pl.Buffered(1))
        except Exception:  # pragma: no cover - jax without Buffered(1) support
            out = run(None)

        return out.reshape(n_pad, D)[:N].reshape(B, S, D)

    # ----------------------------------------------------------------- onehot
    def _forward_onehot(self, inp, training, seed):
        B, S, Vin = inp.shape
        D, V = self.D, self.V
        assert Vin == V
        x = inp.reshape(-1, V)
        N = x.shape[0]

        # K (=V): pad to a 128-multiple so an MXU-friendly tk always divides;
        # zero rows/cols contribute nothing to the accumulator.
        V_pad = _round_up(V, 128)
        w = self.weight
        if V_pad != V:
            x = jnp.pad(x, ((0, 0), (0, V_pad - V)))
            w = jnp.pad(w, ((0, V_pad - V), (0, 0)))
        tk = next(t for t in (512, 256, 128) if V_pad % t == 0)

        # M: never copy-pad the big (N, V) operand to a full tile; only round
        # rows up to a sublane multiple when needed.  Ragged tails are handled
        # by the uneven grid (OOB tail rows are never written back).
        if N % 8 != 0:
            x = jnp.pad(x, ((0, _round_up(N, 8) - N), (0, 0)))
        m_rows = x.shape[0]
        tm = min(self.TM, m_rows)
        grid_m = pl.cdiv(m_rows, tm)

        if self.ONEHOT_IN_BF16:
            # one-hot 0/1 is exact in bf16: halves HBM traffic on the dominant
            # N x V read (flip ONEHOT_IN_BF16 for soft distributions).
            x = x.astype(jnp.bfloat16)

        seed_arr = jnp.asarray([seed], dtype=jnp.int32)
        xb = x.dtype.itemsize
        vmem_limit = int(max(32 << 20, min(
            100 << 20,
            2 * tm * tk * xb + 2 * tk * D * 4 + 2 * tm * D * 4 + (2 << 20))))

        kernel = functools.partial(
            _onehot_matmul_kernel, p=self.d, training=training)
        out = pl.pallas_call(
            kernel,
            out_shape=jax.ShapeDtypeStruct((m_rows, D), jnp.float32),
            grid_spec=pltpu.PrefetchScalarGridSpec(
                num_scalar_prefetch=1,                   # seed -> SMEM
                grid=(grid_m, V_pad // tk),
                in_specs=[
                    pl.BlockSpec((tm, tk), lambda i, k, seed_r: (i, k)),
                    pl.BlockSpec((tk, D), lambda i, k, seed_r: (k, 0)),
                ],
                out_specs=pl.BlockSpec((tm, D), lambda i, k, seed_r: (i, 0)),
            ),
            compiler_params=pltpu.CompilerParams(
                dimension_semantics=("parallel", "arbitrary"),
                vmem_limit_bytes=vmem_limit),
        )(seed_arr, x, w)
        return out[:N].reshape(B, S, D)

    # ------------------------------------------------------------------ misc
    def _host_dropout(self, x, training, seed):
        if not training or self.d <= 0.0:
            return x
        if self.d >= 1.0:
            return jnp.zeros_like(x)
        keep = jax.random.bernoulli(jax.random.PRNGKey(seed), 1.0 - self.d,
                                    x.shape)
        return jnp.where(keep, x / (1.0 - self.d), 0.0)

    def __call__(self, inp, format="index", training=False, seed=0,
                 assume_hard_onehot=False):
        if format == "index":
            return self._forward_index(inp, training, seed)
        elif format == "onehot":
            if assume_hard_onehot:
                # exact one-hot rows: skip the O(N*V*D) matmul and the N x V
                # HBM read entirely; dispatch to the gather path.
                ids = jnp.argmax(inp, axis=-1).astype(jnp.int32)
                return self._forward_index(ids, training, seed)
            return self._forward_onehot(inp, training, seed)
        else:
            raise ValueError(f"unknown format: {format}")


if __name__ == "__main__":
    key = jax.random.PRNGKey(0)
    k_w, k_ids = jax.random.split(key)

    ntoken, ninp, dropout = 127, 64, 0.5   # V = 128, D = 64 (pack=2 lane-dense)
    B, S = 2, 8

    net = NetW(ntoken, ninp, dropout, k_w)

    ids = jax.random.randint(k_ids, (B, S), 0, ntoken + 1, dtype=jnp.int32)

    # index path (embedding lookup), eval mode -> dropout is identity
    out_idx = net(ids, format="index", training=False)
    jax.block_until_ready(out_idx)

    # onehot path (shared-weight linear), eval mode
    onehot = jax.nn.one_hot(ids, ntoken + 1, dtype=jnp.float32)
    out_oh = net(onehot, format="onehot", training=False)
    jax.block_until_ready(out_oh)

    # onehot path with the argmax -> gather fast dispatch
    out_oh_fast = net(onehot, format="onehot", training=False,
                      assume_hard_onehot=True)
    jax.block_until_ready(out_oh_fast)

    # reference check against plain-JAX embedding lookup
    ref = net.weight[ids]
    assert out_idx.shape == (B, S, ninp)
    assert out_oh.shape == (B, S, ninp)
    assert out_oh_fast.shape == (B, S, ninp)
    assert jnp.allclose(out_idx, ref, atol=1e-6), "index path mismatch"
    assert jnp.allclose(out_oh, ref, atol=1e-5), "onehot path mismatch"
    assert jnp.allclose(out_oh_fast, ref, atol=1e-6), "argmax->gather mismatch"

    print("KERNEL_OK")
</pallas_src>

<mosaic_0001>
module attributes {stable_mosaic.version = 11 : i64} {
  func.func @_embed_gather_kernel(%arg0: i32, %arg1: memref<16xi32, #tpu.memory_space<smem>>, %arg2: memref<1xi32, #tpu.memory_space<smem>>, %arg3: memref<128x64xf32, #tpu.memory_space<vmem>>, %arg4: memref<8x128xf32, #tpu.memory_space<vmem>>) attributes {dimension_semantics = [#tpu.dimension_semantics<parallel>], iteration_bounds = array<i64: 1>, scalar_prefetch = 2 : i64, scratch_operands = 0 : i64, tpu.core_type = #tpu.core_type<tc>, window_params = [{pipeline_mode = #tpu.pipeline_mode<synchronous>, transform_indices = @transform_0, window_bounds = array<i64: 128, 64>}, {transform_indices = @transform_1, window_bounds = array<i64: 8, 128>}]} {
    %c8_i32 = arith.constant 8 : i32
    %0 = arith.muli %arg0, %c8_i32 : i32
    %c0_i32 = arith.constant 0 : i32
    %c8_i32_0 = arith.constant 8 : i32
    %1 = arith.muli %c0_i32, %c8_i32_0 : i32
    %2 = tpu.assume_multiple %1, 8 : i32
    %3 = arith.addi %0, %2 : i32
    %c2_i32 = arith.constant 2 : i32
    %4 = arith.muli %3, %c2_i32 : i32
    %c0_i32_1 = arith.constant 0 : i32
    %5 = arith.addi %4, %c0_i32_1 : i32
    %c0_i32_2 = arith.constant 0 : i32
    %6 = arith.addi %5, %c0_i32_2 : i32
    %7 = arith.index_cast %6 : i32 to index
    %8 = memref.load %arg1[%7] : memref<16xi32, #tpu.memory_space<smem>>
    %c0_i32_3 = arith.constant 0 : i32
    %9 = arith.maxsi %8, %c0_i32_3 : i32
    %c127_i32 = arith.constant 127 : i32
    %10 = arith.minsi %9, %c127_i32 : i32
    %11 = arith.index_cast %10 : i32 to index
    %c0 = arith.constant 0 : index
    %12 = vector.load %arg3[%11, %c0] : memref<128x64xf32, #tpu.memory_space<vmem>>, vector<1x64xf32>
    %c1_i32 = arith.constant 1 : i32
    %13 = arith.addi %5, %c1_i32 : i32
    %14 = arith.index_cast %13 : i32 to index
    %15 = memref.load %arg1[%14] : memref<16xi32, #tpu.memory_space<smem>>
    %c0_i32_4 = arith.constant 0 : i32
    %16 = arith.maxsi %15, %c0_i32_4 : i32
    %c127_i32_5 = arith.constant 127 : i32
    %17 = arith.minsi %16, %c127_i32_5 : i32
    %18 = arith.index_cast %17 : i32 to index
    %c0_6 = arith.constant 0 : index
    %19 = vector.load %arg3[%18, %c0_6] : memref<128x64xf32, #tpu.memory_space<vmem>>, vector<1x64xf32>
    %20 = tpu.concatenate %12, %19 in 1 : vector<1x64xf32>, vector<1x64xf32> -> vector<1x128xf32>
    %c2_i32_7 = arith.constant 2 : i32
    %21 = arith.addi %4, %c2_i32_7 : i32
    %c0_i32_8 = arith.constant 0 : i32
    %22 = arith.addi %21, %c0_i32_8 : i32
    %23 = arith.index_cast %22 : i32 to index
    %24 = memref.load %arg1[%23] : memref<16xi32, #tpu.memory_space<smem>>
    %c0_i32_9 = arith.constant 0 : i32
    %25 = arith.maxsi %24, %c0_i32_9 : i32
    %c127_i32_10 = arith.constant 127 : i32
    %26 = arith.minsi %25, %c127_i32_10 : i32
    %27 = arith.index_cast %26 : i32 to index
    %c0_11 = arith.constant 0 : index
    %28 = vector.load %arg3[%27, %c0_11] : memref<128x64xf32, #tpu.memory_space<vmem>>, vector<1x64xf32>
    %c1_i32_12 = arith.constant 1 : i32
    %29 = arith.addi %21, %c1_i32_12 : i32
    %30 = arith.index_cast %29 : i32 to index
    %31 = memref.load %arg1[%30] : memref<16xi32, #tpu.memory_space<smem>>
    %c0_i32_13 = arith.constant 0 : i32
    %32 = arith.maxsi %31, %c0_i32_13 : i32
    %c127_i32_14 = arith.constant 127 : i32
    %33 = arith.minsi %32, %c127_i32_14 : i32
    %34 = arith.index_cast %33 : i32 to index
    %c0_15 = arith.constant 0 : index
    %35 = vector.load %arg3[%34, %c0_15] : memref<128x64xf32, #tpu.memory_space<vmem>>, vector<1x64xf32>
    %36 = tpu.concatenate %28, %35 in 1 : vector<1x64xf32>, vector<1x64xf32> -> vector<1x128xf32>
    %c4_i32 = arith.constant 4 : i32
    %37 = arith.addi %4, %c4_i32 : i32
    %c0_i32_16 = arith.constant 0 : i32
    %38 = arith.addi %37, %c0_i32_16 : i32
    %39 = arith.index_cast %38 : i32 to index
    %40 = memref.load %arg1[%39] : memref<16xi32, #tpu.memory_space<smem>>
    %c0_i32_17 = arith.constant 0 : i32
    %41 = arith.maxsi %40, %c0_i32_17 : i32
    %c127_i32_18 = arith.constant 127 : i32
    %42 = arith.minsi %41, %c127_i32_18 : i32
    %43 = arith.index_cast %42 : i32 to index
    %c0_19 = arith.constant 0 : index
    %44 = vector.load %arg3[%43, %c0_19] : memref<128x64xf32, #tpu.memory_space<vmem>>, vector<1x64xf32>
    %c1_i32_20 = arith.constant 1 : i32
    %45 = arith.addi %37, %c1_i32_20 : i32
    %46 = arith.index_cast %45 : i32 to index
    %47 = memref.load %arg1[%46] : memref<16xi32, #tpu.memory_space<smem>>
    %c0_i32_21 = arith.constant 0 : i32
    %48 = arith.maxsi %47, %c0_i32_21 : i32
    %c127_i32_22 = arith.constant 127 : i32
    %49 = arith.minsi %48, %c127_i32_22 : i32
    %50 = arith.index_cast %49 : i32 to index
    %c0_23 = arith.constant 0 : index
    %51 = vector.load %arg3[%50, %c0_23] : memref<128x64xf32, #tpu.memory_space<vmem>>, vector<1x64xf32>
    %52 = tpu.concatenate %44, %51 in 1 : vector<1x64xf32>, vector<1x64xf32> -> vector<1x128xf32>
    %c6_i32 = arith.constant 6 : i32
    %53 = arith.addi %4, %c6_i32 : i32
    %c0_i32_24 = arith.constant 0 : i32
    %54 = arith.addi %53, %c0_i32_24 : i32
    %55 = arith.index_cast %54 : i32 to index
    %56 = memref.load %arg1[%55] : memref<16xi32, #tpu.memory_space<smem>>
    %c0_i32_25 = arith.constant 0 : i32
    %57 = arith.maxsi %56, %c0_i32_25 : i32
    %c127_i32_26 = arith.constant 127 : i32
    %58 = arith.minsi %57, %c127_i32_26 : i32
    %59 = arith.index_cast %58 : i32 to index
    %c0_27 = arith.constant 0 : index
    %60 = vector.load %arg3[%59, %c0_27] : memref<128x64xf32, #tpu.memory_space<vmem>>, vector<1x64xf32>
    %c1_i32_28 = arith.constant 1 : i32
    %61 = arith.addi %53, %c1_i32_28 : i32
    %62 = arith.index_cast %61 : i32 to index
    %63 = memref.load %arg1[%62] : memref<16xi32, #tpu.memory_space<smem>>
    %c0_i32_29 = arith.constant 0 : i32
    %64 = arith.maxsi %63, %c0_i32_29 : i32
    %c127_i32_30 = arith.constant 127 : i32
    %65 = arith.minsi %64, %c127_i32_30 : i32
    %66 = arith.index_cast %65 : i32 to index
    %c0_31 = arith.constant 0 : index
    %67 = vector.load %arg3[%66, %c0_31] : memref<128x64xf32, #tpu.memory_space<vmem>>, vector<1x64xf32>
    %68 = tpu.concatenate %60, %67 in 1 : vector<1x64xf32>, vector<1x64xf32> -> vector<1x128xf32>
    %c8_i32_32 = arith.constant 8 : i32
    %69 = arith.addi %4, %c8_i32_32 : i32
    %c0_i32_33 = arith.constant 0 : i32
    %70 = arith.addi %69, %c0_i32_33 : i32
    %71 = arith.index_cast %70 : i32 to index
    %72 = memref.load %arg1[%71] : memref<16xi32, #tpu.memory_space<smem>>
    %c0_i32_34 = arith.constant 0 : i32
    %73 = arith.maxsi %72, %c0_i32_34 : i32
    %c127_i32_35 = arith.constant 127 : i32
    %74 = arith.minsi %73, %c127_i32_35 : i32
    %75 = arith.index_cast %74 : i32 to index
    %c0_36 = arith.constant 0 : index
    %76 = vector.load %arg3[%75, %c0_36] : memref<128x64xf32, #tpu.memory_space<vmem>>, vector<1x64xf32>
    %c1_i32_37 = arith.constant 1 : i32
    %77 = arith.addi %69, %c1_i32_37 : i32
    %78 = arith.index_cast %77 : i32 to index
    %79 = memref.load %arg1[%78] : memref<16xi32, #tpu.memory_space<smem>>
    %c0_i32_38 = arith.constant 0 : i32
    %80 = arith.maxsi %79, %c0_i32_38 : i32
    %c127_i32_39 = arith.constant 127 : i32
    %81 = arith.minsi %80, %c127_i32_39 : i32
    %82 = arith.index_cast %81 : i32 to index
    %c0_40 = arith.constant 0 : index
    %83 = vector.load %arg3[%82, %c0_40] : memref<128x64xf32, #tpu.memory_space<vmem>>, vector<1x64xf32>
    %84 = tpu.concatenate %76, %83 in 1 : vector<1x64xf32>, vector<1x64xf32> -> vector<1x128xf32>
    %c10_i32 = arith.constant 10 : i32
    %85 = arith.addi %4, %c10_i32 : i32
    %c0_i32_41 = arith.constant 0 : i32
    %86 = arith.addi %85, %c0_i32_41 : i32
    %87 = arith.index_cast %86 : i32 to index
    %88 = memref.load %arg1[%87] : memref<16xi32, #tpu.memory_space<smem>>
    %c0_i32_42 = arith.constant 0 : i32
    %89 = arith.maxsi %88, %c0_i32_42 : i32
    %c127_i32_43 = arith.constant 127 : i32
    %90 = arith.minsi %89, %c127_i32_43 : i32
    %91 = arith.index_cast %90 : i32 to index
    %c0_44 = arith.constant 0 : index
    %92 = vector.load %arg3[%91, %c0_44] : memref<128x64xf32, #tpu.memory_space<vmem>>, vector<1x64xf32>
    %c1_i32_45 = arith.constant 1 : i32
    %93 = arith.addi %85, %c1_i32_45 : i32
    %94 = arith.index_cast %93 : i32 to index
    %95 = memref.load %arg1[%94] : memref<16xi32, #tpu.memory_space<smem>>
    %c0_i32_46 = arith.constant 0 : i32
    %96 = arith.maxsi %95, %c0_i32_46 : i32
    %c127_i32_47 = arith.constant 127 : i32
    %97 = arith.minsi %96, %c127_i32_47 : i32
    %98 = arith.index_cast %97 : i32 to index
    %c0_48 = arith.constant 0 : index
    %99 = vector.load %arg3[%98, %c0_48] : memref<128x64xf32, #tpu.memory_space<vmem>>, vector<1x64xf32>
    %100 = tpu.concatenate %92, %99 in 1 : vector<1x64xf32>, vector<1x64xf32> -> vector<1x128xf32>
    %c12_i32 = arith.constant 12 : i32
    %101 = arith.addi %4, %c12_i32 : i32
    %c0_i32_49 = arith.constant 0 : i32
    %102 = arith.addi %101, %c0_i32_49 : i32
    %103 = arith.index_cast %102 : i32 to index
    %104 = memref.load %arg1[%103] : memref<16xi32, #tpu.memory_space<smem>>
    %c0_i32_50 = arith.constant 0 : i32
    %105 = arith.maxsi %104, %c0_i32_50 : i32
    %c127_i32_51 = arith.constant 127 : i32
    %106 = arith.minsi %105, %c127_i32_51 : i32
    %107 = arith.index_cast %106 : i32 to index
    %c0_52 = arith.constant 0 : index
    %108 = vector.load %arg3[%107, %c0_52] : memref<128x64xf32, #tpu.memory_space<vmem>>, vector<1x64xf32>
    %c1_i32_53 = arith.constant 1 : i32
    %109 = arith.addi %101, %c1_i32_53 : i32
    %110 = arith.index_cast %109 : i32 to index
    %111 = memref.load %arg1[%110] : memref<16xi32, #tpu.memory_space<smem>>
    %c0_i32_54 = arith.constant 0 : i32
    %112 = arith.maxsi %111, %c0_i32_54 : i32
    %c127_i32_55 = arith.constant 127 : i32
    %113 = arith.minsi %112, %c127_i32_55 : i32
    %114 = arith.index_cast %113 : i32 to index
    %c0_56 = arith.constant 0 : index
    %115 = vector.load %arg3[%114, %c0_56] : memref<128x64xf32, #tpu.memory_space<vmem>>, vector<1x64xf32>
    %116 = tpu.concatenate %108, %115 in 1 : vector<1x64xf32>, vector<1x64xf32> -> vector<1x128xf32>
    %c14_i32 = arith.constant 14 : i32
    %117 = arith.addi %4, %c14_i32 : i32
    %c0_i32_57 = arith.constant 0 : i32
    %118 = arith.addi %117, %c0_i32_57 : i32
    %119 = arith.index_cast %118 : i32 to index
    %120 = memref.load %arg1[%119] : memref<16xi32, #tpu.memory_space<smem>>
    %c0_i32_58 = arith.constant 0 : i32
    %121 = arith.maxsi %120, %c0_i32_58 : i32
    %c127_i32_59 = arith.constant 127 : i32
    %122 = arith.minsi %121, %c127_i32_59 : i32
    %123 = arith.index_cast %122 : i32 to index
    %c0_60 = arith.constant 0 : index
    %124 = vector.load %arg3[%123, %c0_60] : memref<128x64xf32, #tpu.memory_space<vmem>>, vector<1x64xf32>
    %c1_i32_61 = arith.constant 1 : i32
    %125 = arith.addi %117, %c1_i32_61 : i32
    %126 = arith.index_cast %125 : i32 to index
    %127 = memref.load %arg1[%126] : memref<16xi32, #tpu.memory_space<smem>>
    %c0_i32_62 = arith.constant 0 : i32
    %128 = arith.maxsi %127, %c0_i32_62 : i32
    %c127_i32_63 = arith.constant 127 : i32
    %129 = arith.minsi %128, %c127_i32_63 : i32
    %130 = arith.index_cast %129 : i32 to index
    %c0_64 = arith.constant 0 : index
    %131 = vector.load %arg3[%130, %c0_64] : memref<128x64xf32, #tpu.memory_space<vmem>>, vector<1x64xf32>
    %132 = tpu.concatenate %124, %131 in 1 : vector<1x64xf32>, vector<1x64xf32> -> vector<1x128xf32>
    %133 = tpu.concatenate %20, %36, %52, %68, %84, %100, %116, %132 in 0 : vector<1x128xf32>, vector<1x128xf32>, vector<1x128xf32>, vector<1x128xf32>, vector<1x128xf32>, vector<1x128xf32>, vector<1x128xf32>, vector<1x128xf32> -> vector<8x128xf32>
    %134 = arith.index_cast %2 : i32 to index
    %c0_65 = arith.constant 0 : index
    %135 = vector.load %arg4[%134, %c0_65] : memref<8x128xf32, #tpu.memory_space<vmem>>, vector<8x128xf32>
    tpu.vector_store %arg4[%134, %c0_65], %133 {strides = array<i32>} : memref<8x128xf32, #tpu.memory_space<vmem>>, vector<8x128xf32>,
    %c1_i32_66 = arith.constant 1 : i32
    return
  }
  func.func @transform_0(%arg0: i32, %arg1: memref<16xi32, #tpu.memory_space<smem>>, %arg2: memref<1xi32, #tpu.memory_space<smem>>) -> (i32, i32) {
    %c0_i32 = arith.constant 0 : i32
    %c0_i32_0 = arith.constant 0 : i32
    %c0_i32_1 = arith.constant 0 : i32
    return %c0_i32, %c0_i32_0 : i32, i32
  }
  func.func @transform_1(%arg0: i32, %arg1: memref<16xi32, #tpu.memory_space<smem>>, %arg2: memref<1xi32, #tpu.memory_space<smem>>) -> (i32, i32) {
    %c0_i32 = arith.constant 0 : i32
    %c0_i32_0 = arith.constant 0 : i32
    return %arg0, %c0_i32 : i32, i32
  }
}

module attributes {stable_mosaic.version = 11 : i64} {
  func.func @_embed_gather_kernel(%arg0: i32, %arg1: memref<16xi32, #tpu.memory_space<smem>>, %arg2: memref<1xi32, #tpu.memory_space<smem>>, %arg3: memref<128x64xf32, #tpu.memory_space<vmem>>, %arg4: memref<8x128xf32, #tpu.memory_space<vmem>>) attributes {dimension_semantics = [#tpu.dimension_semantics<parallel>], iteration_bounds = array<i64: 1>, scalar_prefetch = 2 : i64, scratch_operands = 0 : i64, tpu.core_type = #tpu.core_type<tc>, window_params = [{pipeline_mode = #tpu.pipeline_mode<synchronous>, transform_indices = @transform_0, window_bounds = array<i64: 128, 64>}, {transform_indices = @transform_1, window_bounds = array<i64: 8, 128>}]} {
    %c8_i32 = arith.constant 8 : i32
    %0 = arith.muli %arg0, %c8_i32 : i32
    %c0_i32 = arith.constant 0 : i32
    %c8_i32_0 = arith.constant 8 : i32
    %1 = arith.muli %c0_i32, %c8_i32_0 : i32
    %2 = tpu.assume_multiple %1, 8 : i32
    %3 = arith.addi %0, %2 : i32
    %c2_i32 = arith.constant 2 : i32
    %4 = arith.muli %3, %c2_i32 : i32
    %c0_i32_1 = arith.constant 0 : i32
    %5 = arith.addi %4, %c0_i32_1 : i32
    %c0_i32_2 = arith.constant 0 : i32
    %6 = arith.addi %5, %c0_i32_2 : i32
    %7 = arith.index_cast %6 : i32 to index
    %8 = memref.load %arg1[%7] : memref<16xi32, #tpu.memory_space<smem>>
    %c0_i32_3 = arith.constant 0 : i32
    %9 = arith.maxsi %8, %c0_i32_3 : i32
    %c127_i32 = arith.constant 127 : i32
    %10 = arith.minsi %9, %c127_i32 : i32
    %11 = arith.index_cast %10 : i32 to index
    %c0 = arith.constant 0 : index
    %12 = vector.load %arg3[%11, %c0] : memref<128x64xf32, #tpu.memory_space<vmem>>, vector<1x64xf32>
    %c1_i32 = arith.constant 1 : i32
    %13 = arith.addi %5, %c1_i32 : i32
    %14 = arith.index_cast %13 : i32 to index
    %15 = memref.load %arg1[%14] : memref<16xi32, #tpu.memory_space<smem>>
    %c0_i32_4 = arith.constant 0 : i32
    %16 = arith.maxsi %15, %c0_i32_4 : i32
    %c127_i32_5 = arith.constant 127 : i32
    %17 = arith.minsi %16, %c127_i32_5 : i32
    %18 = arith.index_cast %17 : i32 to index
    %c0_6 = arith.constant 0 : index
    %19 = vector.load %arg3[%18, %c0_6] : memref<128x64xf32, #tpu.memory_space<vmem>>, vector<1x64xf32>
    %20 = tpu.concatenate %12, %19 in 1 : vector<1x64xf32>, vector<1x64xf32> -> vector<1x128xf32>
    %c2_i32_7 = arith.constant 2 : i32
    %21 = arith.addi %4, %c2_i32_7 : i32
    %c0_i32_8 = arith.constant 0 : i32
    %22 = arith.addi %21, %c0_i32_8 : i32
    %23 = arith.index_cast %22 : i32 to index
    %24 = memref.load %arg1[%23] : memref<16xi32, #tpu.memory_space<smem>>
    %c0_i32_9 = arith.constant 0 : i32
    %25 = arith.maxsi %24, %c0_i32_9 : i32
    %c127_i32_10 = arith.constant 127 : i32
    %26 = arith.minsi %25, %c127_i32_10 : i32
    %27 = arith.index_cast %26 : i32 to index
    %c0_11 = arith.constant 0 : index
    %28 = vector.load %arg3[%27, %c0_11] : memref<128x64xf32, #tpu.memory_space<vmem>>, vector<1x64xf32>
    %c1_i32_12 = arith.constant 1 : i32
    %29 = arith.addi %21, %c1_i32_12 : i32
    %30 = arith.index_cast %29 : i32 to index
    %31 = memref.load %arg1[%30] : memref<16xi32, #tpu.memory_space<smem>>
    %c0_i32_13 = arith.constant 0 : i32
    %32 = arith.maxsi %31, %c0_i32_13 : i32
    %c127_i32_14 = arith.constant 127 : i32
    %33 = arith.minsi %32, %c127_i32_14 : i32
    %34 = arith.index_cast %33 : i32 to index
    %c0_15 = arith.constant 0 : index
    %35 = vector.load %arg3[%34, %c0_15] : memref<128x64xf32, #tpu.memory_space<vmem>>, vector<1x64xf32>
    %36 = tpu.concatenate %28, %35 in 1 : vector<1x64xf32>, vector<1x64xf32> -> vector<1x128xf32>
    %c4_i32 = arith.constant 4 : i32
    %37 = arith.addi %4, %c4_i32 : i32
    %c0_i32_16 = arith.constant 0 : i32
    %38 = arith.addi %37, %c0_i32_16 : i32
    %39 = arith.index_cast %38 : i32 to index
    %40 = memref.load %arg1[%39] : memref<16xi32, #tpu.memory_space<smem>>
    %c0_i32_17 = arith.constant 0 : i32
    %41 = arith.maxsi %40, %c0_i32_17 : i32
    %c127_i32_18 = arith.constant 127 : i32
    %42 = arith.minsi %41, %c127_i32_18 : i32
    %43 = arith.index_cast %42 : i32 to index
    %c0_19 = arith.constant 0 : index
    %44 = vector.load %arg3[%43, %c0_19] : memref<128x64xf32, #tpu.memory_space<vmem>>, vector<1x64xf32>
    %c1_i32_20 = arith.constant 1 : i32
    %45 = arith.addi %37, %c1_i32_20 : i32
    %46 = arith.index_cast %45 : i32 to index
    %47 = memref.load %arg1[%46] : memref<16xi32, #tpu.memory_space<smem>>
    %c0_i32_21 = arith.constant 0 : i32
    %48 = arith.maxsi %47, %c0_i32_21 : i32
    %c127_i32_22 = arith.constant 127 : i32
    %49 = arith.minsi %48, %c127_i32_22 : i32
    %50 = arith.index_cast %49 : i32 to index
    %c0_23 = arith.constant 0 : index
    %51 = vector.load %arg3[%50, %c0_23] : memref<128x64xf32, #tpu.memory_space<vmem>>, vector<1x64xf32>
    %52 = tpu.concatenate %44, %51 in 1 : vector<1x64xf32>, vector<1x64xf32> -> vector<1x128xf32>
    %c6_i32 = arith.constant 6 : i32
    %53 = arith.addi %4, %c6_i32 : i32
    %c0_i32_24 = arith.constant 0 : i32
    %54 = arith.addi %53, %c0_i32_24 : i32
    %55 = arith.index_cast %54 : i32 to index
    %56 = memref.load %arg1[%55] : memref<16xi32, #tpu.memory_space<smem>>
    %c0_i32_25 = arith.constant 0 : i32
    %57 = arith.maxsi %56, %c0_i32_25 : i32
    %c127_i32_26 = arith.constant 127 : i32
    %58 = arith.minsi %57, %c127_i32_26 : i32
    %59 = arith.index_cast %58 : i32 to index
    %c0_27 = arith.constant 0 : index
    %60 = vector.load %arg3[%59, %c0_27] : memref<128x64xf32, #tpu.memory_space<vmem>>, vector<1x64xf32>
    %c1_i32_28 = arith.constant 1 : i32
    %61 = arith.addi %53, %c1_i32_28 : i32
    %62 = arith.index_cast %61 : i32 to index
    %63 = memref.load %arg1[%62] : memref<16xi32, #tpu.memory_space<smem>>
    %c0_i32_29 = arith.constant 0 : i32
    %64 = arith.maxsi %63, %c0_i32_29 : i32
    %c127_i32_30 = arith.constant 127 : i32
    %65 = arith.minsi %64, %c127_i32_30 : i32
    %66 = arith.index_cast %65 : i32 to index
    %c0_31 = arith.constant 0 : index
    %67 = vector.load %arg3[%66, %c0_31] : memref<128x64xf32, #tpu.memory_space<vmem>>, vector<1x64xf32>
    %68 = tpu.concatenate %60, %67 in 1 : vector<1x64xf32>, vector<1x64xf32> -> vector<1x128xf32>
    %c8_i32_32 = arith.constant 8 : i32
    %69 = arith.addi %4, %c8_i32_32 : i32
    %c0_i32_33 = arith.constant 0 : i32
    %70 = arith.addi %69, %c0_i32_33 : i32
    %71 = arith.index_cast %70 : i32 to index
    %72 = memref.load %arg1[%71] : memref<16xi32, #tpu.memory_space<smem>>
    %c0_i32_34 = arith.constant 0 : i32
    %73 = arith.maxsi %72, %c0_i32_34 : i32
    %c127_i32_35 = arith.constant 127 : i32
    %74 = arith.minsi %73, %c127_i32_35 : i32
    %75 = arith.index_cast %74 : i32 to index
    %c0_36 = arith.constant 0 : index
    %76 = vector.load %arg3[%75, %c0_36] : memref<128x64xf32, #tpu.memory_space<vmem>>, vector<1x64xf32>
    %c1_i32_37 = arith.constant 1 : i32
    %77 = arith.addi %69, %c1_i32_37 : i32
    %78 = arith.index_cast %77 : i32 to index
    %79 = memref.load %arg1[%78] : memref<16xi32, #tpu.memory_space<smem>>
    %c0_i32_38 = arith.constant 0 : i32
    %80 = arith.maxsi %79, %c0_i32_38 : i32
    %c127_i32_39 = arith.constant 127 : i32
    %81 = arith.minsi %80, %c127_i32_39 : i32
    %82 = arith.index_cast %81 : i32 to index
    %c0_40 = arith.constant 0 : index
    %83 = vector.load %arg3[%82, %c0_40] : memref<128x64xf32, #tpu.memory_space<vmem>>, vector<1x64xf32>
    %84 = tpu.concatenate %76, %83 in 1 : vector<1x64xf32>, vector<1x64xf32> -> vector<1x128xf32>
    %c10_i32 = arith.constant 10 : i32
    %85 = arith.addi %4, %c10_i32 : i32
    %c0_i32_41 = arith.constant 0 : i32
    %86 = arith.addi %85, %c0_i32_41 : i32
    %87 = arith.index_cast %86 : i32 to index
    %88 = memref.load %arg1[%87] : memref<16xi32, #tpu.memory_space<smem>>
    %c0_i32_42 = arith.constant 0 : i32
    %89 = arith.maxsi %88, %c0_i32_42 : i32
    %c127_i32_43 = arith.constant 127 : i32
    %90 = arith.minsi %89, %c127_i32_43 : i32
    %91 = arith.index_cast %90 : i32 to index
    %c0_44 = arith.constant 0 : index
    %92 = vector.load %arg3[%91, %c0_44] : memref<128x64xf32, #tpu.memory_space<vmem>>, vector<1x64xf32>
    %c1_i32_45 = arith.constant 1 : i32
    %93 = arith.addi %85, %c1_i32_45 : i32
    %94 = arith.index_cast %93 : i32 to index
    %95 = memref.load %arg1[%94] : memref<16xi32, #tpu.memory_space<smem>>
    %c0_i32_46 = arith.constant 0 : i32
    %96 = arith.maxsi %95, %c0_i32_46 : i32
    %c127_i32_47 = arith.constant 127 : i32
    %97 = arith.minsi %96, %c127_i32_47 : i32
    %98 = arith.index_cast %97 : i32 to index
    %c0_48 = arith.constant 0 : index
    %99 = vector.load %arg3[%98, %c0_48] : memref<128x64xf32, #tpu.memory_space<vmem>>, vector<1x64xf32>
    %100 = tpu.concatenate %92, %99 in 1 : vector<1x64xf32>, vector<1x64xf32> -> vector<1x128xf32>
    %c12_i32 = arith.constant 12 : i32
    %101 = arith.addi %4, %c12_i32 : i32
    %c0_i32_49 = arith.constant 0 : i32
    %102 = arith.addi %101, %c0_i32_49 : i32
    %103 = arith.index_cast %102 : i32 to index
    %104 = memref.load %arg1[%103] : memref<16xi32, #tpu.memory_space<smem>>
    %c0_i32_50 = arith.constant 0 : i32
    %105 = arith.maxsi %104, %c0_i32_50 : i32
    %c127_i32_51 = arith.constant 127 : i32
    %106 = arith.minsi %105, %c127_i32_51 : i32
    %107 = arith.index_cast %106 : i32 to index
    %c0_52 = arith.constant 0 : index
    %108 = vector.load %arg3[%107, %c0_52] : memref<128x64xf32, #tpu.memory_space<vmem>>, vector<1x64xf32>
    %c1_i32_53 = arith.constant 1 : i32
    %109 = arith.addi %101, %c1_i32_53 : i32
    %110 = arith.index_cast %109 : i32 to index
    %111 = memref.load %arg1[%110] : memref<16xi32, #tpu.memory_space<smem>>
    %c0_i32_54 = arith.constant 0 : i32
    %112 = arith.maxsi %111, %c0_i32_54 : i32
    %c127_i32_55 = arith.constant 127 : i32
    %113 = arith.minsi %112, %c127_i32_55 : i32
    %114 = arith.index_cast %113 : i32 to index
    %c0_56 = arith.constant 0 : index
    %115 = vector.load %arg3[%114, %c0_56] : memref<128x64xf32, #tpu.memory_space<vmem>>, vector<1x64xf32>
    %116 = tpu.concatenate %108, %115 in 1 : vector<1x64xf32>, vector<1x64xf32> -> vector<1x128xf32>
    %c14_i32 = arith.constant 14 : i32
    %117 = arith.addi %4, %c14_i32 : i32
    %c0_i32_57 = arith.constant 0 : i32
    %118 = arith.addi %117, %c0_i32_57 : i32
    %119 = arith.index_cast %118 : i32 to index
    %120 = memref.load %arg1[%119] : memref<16xi32, #tpu.memory_space<smem>>
    %c0_i32_58 = arith.constant 0 : i32
    %121 = arith.maxsi %120, %c0_i32_58 : i32
    %c127_i32_59 = arith.constant 127 : i32
    %122 = arith.minsi %121, %c127_i32_59 : i32
    %123 = arith.index_cast %122 : i32 to index
    %c0_60 = arith.constant 0 : index
    %124 = vector.load %arg3[%123, %c0_60] : memref<128x64xf32, #tpu.memory_space<vmem>>, vector<1x64xf32>
    %c1_i32_61 = arith.constant 1 : i32
    %125 = arith.addi %117, %c1_i32_61 : i32
    %126 = arith.index_cast %125 : i32 to index
    %127 = memref.load %arg1[%126] : memref<16xi32, #tpu.memory_space<smem>>
    %c0_i32_62 = arith.constant 0 : i32
    %128 = arith.maxsi %127, %c0_i32_62 : i32
    %c127_i32_63 = arith.constant 127 : i32
    %129 = arith.minsi %128, %c127_i32_63 : i32
    %130 = arith.index_cast %129 : i32 to index
    %c0_64 = arith.constant 0 : index
    %131 = vector.load %arg3[%130, %c0_64] : memref<128x64xf32, #tpu.memory_space<vmem>>, vector<1x64xf32>
    %132 = tpu.concatenate %124, %131 in 1 : vector<1x64xf32>, vector<1x64xf32> -> vector<1x128xf32>
    %133 = tpu.concatenate %20, %36, %52, %68, %84, %100, %116, %132 in 0 : vector<1x128xf32>, vector<1x128xf32>, vector<1x128xf32>, vector<1x128xf32>, vector<1x128xf32>, vector<1x128xf32>, vector<1x128xf32>, vector<1x128xf32> -> vector<8x128xf32>
    %134 = arith.index_cast %2 : i32 to index
    %c0_65 = arith.constant 0 : index
    %135 = vector.load %arg4[%134, %c0_65] : memref<8x128xf32, #tpu.memory_space<vmem>>, vector<8x128xf32>
    tpu.vector_store %arg4[%134, %c0_65], %133 {strides = array<i32>} : memref<8x128xf32, #tpu.memory_space<vmem>>, vector<8x128xf32>,
    %c1_i32_66 = arith.constant 1 : i32
    return
  }
  func.func @transform_0(%arg0: i32, %arg1: memref<16xi32, #tpu.memory_space<smem>>, %arg2: memref<1xi32, #tpu.memory_space<smem>>) -> (i32, i32) {
    %c0_i32 = arith.constant 0 : i32
    %c0_i32_0 = arith.constant 0 : i32
    %c0_i32_1 = arith.constant 0 : i32
    return %c0_i32, %c0_i32_0 : i32, i32
  }
  func.func @transform_1(%arg0: i32, %arg1: memref<16xi32, #tpu.memory_space<smem>>, %arg2: memref<1xi32, #tpu.memory_space<smem>>) -> (i32, i32) {
    %c0_i32 = arith.constant 0 : i32
    %c0_i32_0 = arith.constant 0 : i32
    return %arg0, %c0_i32 : i32, i32
  }
}

</mosaic_0001>

<llo_original>
// kernel: tpu_custom_call.1
$region0: #{tpu_custom_call.1}
  #allocation0 [shape = 'u32[]', space=smem, size = 0x4, offset = 0x4, fixed_abs, tag = 'smem constant byte address 0x4 - core index']
  #allocation1 [shape = 'u32[72,128]{1,0:T(1,128)}', space=vmem, size = 0x9000, scoped, tag = 'internal scratch']
  #allocation2 [shape = 's32[1]{0}', space=sflag, size = 0x4, scoped, tag = 'scoped memory for tpu_custom_call.1']
  #allocation3 [shape = 'u8[512]{0}', space=smem, size = 0x200, scoped, tag = 'prefetched SMEM operand 0']
  #allocation4 [shape = 's32[1]{0:T(128)S(6)}', space=smem, size = 0x200, scoped, tag = 'prefetched SMEM operand 1']
  %s0 = inlined_call_operand.vmem [shape: s32[16], index: 0, kind: input, shape index: {}]
  %s1 = inlined_call_operand.<no memory space> [shape: s32[1], index: 1, kind: input, shape index: {}]
  %s2 = inlined_call_operand.vmem [shape: f32[128,64], index: 2, kind: input, shape index: {}]
  %s3 = inlined_call_operand.hbm [shape: f32[8,128], index: 3, kind: output, shape index: {}]
  %s4 = sld [smem:[#allocation0]]
  $region14: #{tpu_custom_call.1} parent=0
    _
  %s6 = ssub.s32 1, %s4
  %s7 = scalar_select 0, %s6, %s4
  %s9 = sshll.u32 %s0, 4
  %s10 = int_to_ptr.vmem [resolvable:$true] %s9
  %12 = dma.vmem_to_smem %s10, 16, [#allocation3], [#allocation2]
  %13 = sst [smem:[#allocation4]] %s1
  %15 = dma.done [#allocation2], 16
  %16 = sfence
  $region1: #{tpu_custom_call.1} parent=0
    #allocation5 [shape = 'u8[4096]{0}', space=vmem, size = 0x1000, scoped, tag = 'output window, operand 0, single buffered']
    #allocation6 [shape = 's32[1]{0}', space=sflag, size = 0x4, scoped, tag = 'scoped memory for tpu_custom_call.1']
    %17 = vsyncpa [#allocation6], 0
    // Predicated region
    $region2: #{tpu_custom_call.1} parent=1 // pred_check
      _
    $region3: #{tpu_custom_call.1} parent=1 // pred_check_branch
      %19 = sbr.rel (0) target = $region5
    $region4: #{tpu_custom_call.1} parent=1 // pred_region
      _
    $region5: #{tpu_custom_call.1} parent=1 // pred_fallthru
      _
    %s20 = smul.u32 0, 8
    %s21 = sadd.s32 %s20, 0
    %s22 = smul.u32 %s21, 2
    %s23 = sld [smem:[#allocation3 + %s22]]
    %p24 = scmp.gt.s32.totalorder %s23, 0
    %s25 = scalar_select %p24, %s23, 0
    %p26 = scmp.lt.s32.totalorder %s25, 127
    %s27 = scalar_select %p26, %s25, 127
    %s28 = scalar_lea.vmem %s2, %s27
    %v29 = vld [vmem:[%s28] sm:$0x1]
    %s30 = sadd.s32 %s22, 1
    %s31 = sld [smem:[#allocation3 + %s30]]
    %p32 = scmp.gt.s32.totalorder %s31, 0
    %s33 = scalar_select %p32, %s31, 0
    %p34 = scmp.lt.s32.totalorder %s33, 127
    %s35 = scalar_select %p34, %s33, 127
    %s36 = scalar_lea.vmem %s2, %s35
    %v37 = vld [vmem:[%s36] sm:$0x1]
    %39 = vrot.lane.b32.xlu0 %v37, 64
    %v40 = vpop.permute.xlu0 %39
    %vm42 = vcmask 523264
    %v43 = vsel %vm42, %v29, %v40
    %s44 = sadd.s32 %s22, 2
    %s45 = sld [smem:[#allocation3 + %s44]]
    %p46 = scmp.gt.s32.totalorder %s45, 0
    %s47 = scalar_select %p46, %s45, 0
    %p48 = scmp.lt.s32.totalorder %s47, 127
    %s49 = scalar_select %p48, %s47, 127
    %s50 = scalar_lea.vmem %s2, %s49
    %v51 = vld [vmem:[%s50] sm:$0x1]
    %s52 = sadd.s32 %s22, 3
    %s53 = sld [smem:[#allocation3 + %s52]]
    %p54 = scmp.gt.s32.totalorder %s53, 0
    %s55 = scalar_select %p54, %s53, 0
    %p56 = scmp.lt.s32.totalorder %s55, 127
    %s57 = scalar_select %p56, %s55, 127
    %s58 = scalar_lea.vmem %s2, %s57
    %v59 = vld [vmem:[%s58] sm:$0x1]
    %61 = vrot.lane.b32.xlu0 %v59, 64
    %v62 = vpop.permute.xlu0 %61
    %v64 = vsel %vm42, %v51, %v62
    %s65 = sadd.s32 %s22, 4
    %s66 = sld [smem:[#allocation3 + %s65]]
    %p67 = scmp.gt.s32.totalorder %s66, 0
    %s68 = scalar_select %p67, %s66, 0
    %p69 = scmp.lt.s32.totalorder %s68, 127
    %s70 = scalar_select %p69, %s68, 127
    %s71 = scalar_lea.vmem %s2, %s70
    %v72 = vld [vmem:[%s71] sm:$0x1]
    %s73 = sadd.s32 %s22, 5
    %s74 = sld [smem:[#allocation3 + %s73]]
    %p75 = scmp.gt.s32.totalorder %s74, 0
    %s76 = scalar_select %p75, %s74, 0
    %p77 = scmp.lt.s32.totalorder %s76, 127
    %s78 = scalar_select %p77, %s76, 127
    %s79 = scalar_lea.vmem %s2, %s78
    %v80 = vld [vmem:[%s79] sm:$0x1]
    %82 = vrot.lane.b32.xlu0 %v80, 64
    %v83 = vpop.permute.xlu0 %82
    %v85 = vsel %vm42, %v72, %v83
    %s86 = sadd.s32 %s22, 6
    %s87 = sld [smem:[#allocation3 + %s86]]
    %p88 = scmp.gt.s32.totalorder %s87, 0
    %s89 = scalar_select %p88, %s87, 0
    %p90 = scmp.lt.s32.totalorder %s89, 127
    %s91 = scalar_select %p90, %s89, 127
    %s92 = scalar_lea.vmem %s2, %s91
    %v93 = vld [vmem:[%s92] sm:$0x1]
    %s94 = sadd.s32 %s22, 7
    %s95 = sld [smem:[#allocation3 + %s94]]
    %p96 = scmp.gt.s32.totalorder %s95, 0
    %s97 = scalar_select %p96, %s95, 0
    %p98 = scmp.lt.s32.totalorder %s97, 127
    %s99 = scalar_select %p98, %s97, 127
    %s100 = scalar_lea.vmem %s2, %s99
    %v101 = vld [vmem:[%s100] sm:$0x1]
    %103 = vrot.lane.b32.xlu0 %v101, 64
    %v104 = vpop.permute.xlu0 %103
    %v106 = vsel %vm42, %v93, %v104
    %s107 = sadd.s32 %s22, 8
    %s108 = sld [smem:[#allocation3 + %s107]]
    %p109 = scmp.gt.s32.totalorder %s108, 0
    %s110 = scalar_select %p109, %s108, 0
    %p111 = scmp.lt.s32.totalorder %s110, 127
    %s112 = scalar_select %p111, %s110, 127
    %s113 = scalar_lea.vmem %s2, %s112
    %v114 = vld [vmem:[%s113] sm:$0x1]
    %s115 = sadd.s32 %s22, 9
    %s116 = sld [smem:[#allocation3 + %s115]]
    %p117 = scmp.gt.s32.totalorder %s116, 0
    %s118 = scalar_select %p117, %s116, 0
    %p119 = scmp.lt.s32.totalorder %s118, 127
    %s120 = scalar_select %p119, %s118, 127
    %s121 = scalar_lea.vmem %s2, %s120
    %v122 = vld [vmem:[%s121] sm:$0x1]
    %124 = vrot.lane.b32.xlu0 %v122, 64
    %v125 = vpop.permute.xlu0 %124
    %v127 = vsel %vm42, %v114, %v125
    %s128 = sadd.s32 %s22, 10
    %s129 = sld [smem:[#allocation3 + %s128]]
    %p130 = scmp.gt.s32.totalorder %s129, 0
    %s131 = scalar_select %p130, %s129, 0
    %p132 = scmp.lt.s32.totalorder %s131, 127
    %s133 = scalar_select %p132, %s131, 127
    %s134 = scalar_lea.vmem %s2, %s133
    %v135 = vld [vmem:[%s134] sm:$0x1]
    %s136 = sadd.s32 %s22, 11
    %s137 = sld [smem:[#allocation3 + %s136]]
    %p138 = scmp.gt.s32.totalorder %s137, 0
    %s139 = scalar_select %p138, %s137, 0
    %p140 = scmp.lt.s32.totalorder %s139, 127
    %s141 = scalar_select %p140, %s139, 127
    %s142 = scalar_lea.vmem %s2, %s141
    %v143 = vld [vmem:[%s142] sm:$0x1]
    %145 = vrot.lane.b32.xlu0 %v143, 64
    %v146 = vpop.permute.xlu0 %145
    %v148 = vsel %vm42, %v135, %v146
    %s149 = sadd.s32 %s22, 12
    %s150 = sld [smem:[#allocation3 + %s149]]
    %p151 = scmp.gt.s32.totalorder %s150, 0
    %s152 = scalar_select %p151, %s150, 0
    %p153 = scmp.lt.s32.totalorder %s152, 127
    %s154 = scalar_select %p153, %s152, 127
    %s155 = scalar_lea.vmem %s2, %s154
    %v156 = vld [vmem:[%s155] sm:$0x1]
    %s157 = sadd.s32 %s22, 13
    %s158 = sld [smem:[#allocation3 + %s157]]
    %p159 = scmp.gt.s32.totalorder %s158, 0
    %s160 = scalar_select %p159, %s158, 0
    %p161 = scmp.lt.s32.totalorder %s160, 127
    %s162 = scalar_select %p161, %s160, 127
    %s163 = scalar_lea.vmem %s2, %s162
    %v164 = vld [vmem:[%s163] sm:$0x1]
    %166 = vrot.lane.b32.xlu0 %v164, 64
    %v167 = vpop.permute.xlu0 %166
    %v169 = vsel %vm42, %v156, %v167
    %s170 = sadd.s32 %s22, 14
    %s171 = sld [smem:[#allocation3 + %s170]]
    %p172 = scmp.gt.s32.totalorder %s171, 0
    %s173 = scalar_select %p172, %s171, 0
    %p174 = scmp.lt.s32.totalorder %s173, 127
    %s175 = scalar_select %p174, %s173, 127
    %s176 = scalar_lea.vmem %s2, %s175
    %v177 = vld [vmem:[%s176] sm:$0x1]
    %s178 = sadd.s32 %s22, 15
    %s179 = sld [smem:[#allocation3 + %s178]]
    %p180 = scmp.gt.s32.totalorder %s179, 0
    %s181 = scalar_select %p180, %s179, 0
    %p182 = scmp.lt.s32.totalorder %s181, 127
    %s183 = scalar_select %p182, %s181, 127
    %s184 = scalar_lea.vmem %s2, %s183
    %v185 = vld [vmem:[%s184] sm:$0x1]
    %187 = vrot.lane.b32.xlu0 %v185, 64
    %v188 = vpop.permute.xlu0 %187
    %v190 = vsel %vm42, %v177, %v188
    %v192 = vrot.slane %v64, 7
    %v195 = vrot.slane %v85, 6
    %v198 = vrot.slane %v106, 5
    %v201 = vrot.slane %v127, 4
    %v204 = vrot.slane %v148, 3
    %v207 = vrot.slane %v169, 2
    %v210 = vrot.slane %v190, 1
    %vm212 = vcmask 1040384
    %v213 = vsel %vm212, %v43, %v192
    %vm214 = vcmask 1041408
    %v215 = vsel %vm214, %v213, %v195
    %vm216 = vcmask 1042432
    %v217 = vsel %vm216, %v215, %v198
    %vm218 = vcmask 1043456
    %v219 = vsel %vm218, %v217, %v201
    %vm220 = vcmask 1044480
    %v221 = vsel %vm220, %v219, %v204
    %vm222 = vcmask 1045504
    %v223 = vsel %vm222, %v221, %v207
    %vm224 = vcmask 1046528
    %v225 = vsel %vm224, %v223, %v210
    %226 = vst [vmem:[#allocation5] sm:$0xff] %v225
    // Predicated region
    $region6: #{tpu_custom_call.1} parent=1 // pred_check
      _
    $region7: #{tpu_custom_call.1} parent=1 // pred_check_branch
      %228 = sbr.rel (0) target = $region9
    $region8: #{tpu_custom_call.1} parent=1 // pred_region
      %230 = vsyncadd [#allocation6], 0
      %s232 = sshll.u32 [#allocation5], 4
      %s233 = int_to_ptr.vmem [resolvable:$true] %s232
      %s234 = sshll.u32 %s3, 4
      %s235 = int_to_ptr.hbm [resolvable:$true] %s234
      %237 = dma.vmem_to_hbm [thread:$0]  %s233, 128, %s235, [#allocation6]
    $region9: #{tpu_custom_call.1} parent=1 // pred_fallthru
      _
    // Predicated region
    $region10: #{tpu_custom_call.1} parent=1 // pred_check
      _
    $region11: #{tpu_custom_call.1} parent=1 // pred_check_branch
      %239 = sbr.rel (0) target = $region13
    $region12: #{tpu_custom_call.1} parent=1 // pred_region
      %241 = dma.done [#allocation6], 128
    $region13: #{tpu_custom_call.1} parent=1 // pred_fallthru
      _
    %242 = vsyncpa [#allocation6], 1

// kernel: tpu_custom_call.1
$region0: #{tpu_custom_call.1}
  #allocation0 [shape = 'u32[]', space=smem, size = 0x4, offset = 0x4, fixed_abs, tag = 'smem constant byte address 0x4 - core index']
  #allocation1 [shape = 'u32[72,128]{1,0:T(1,128)}', space=vmem, size = 0x9000, scoped, tag = 'internal scratch']
  #allocation2 [shape = 's32[1]{0}', space=sflag, size = 0x4, scoped, tag = 'scoped memory for tpu_custom_call.1']
  #allocation3 [shape = 'u8[512]{0}', space=smem, size = 0x200, scoped, tag = 'prefetched SMEM operand 0']
  #allocation4 [shape = 's32[1]{0:T(128)S(6)}', space=smem, size = 0x200, scoped, tag = 'prefetched SMEM operand 1']
  %s0 = inlined_call_operand.vmem [shape: s32[16], index: 0, kind: input, shape index: {}]
  %s1 = inlined_call_operand.<no memory space> [shape: s32[1], index: 1, kind: input, shape index: {}]
  %s2 = inlined_call_operand.vmem [shape: f32[128,64], index: 2, kind: input, shape index: {}]
  %s3 = inlined_call_operand.hbm [shape: f32[8,128], index: 3, kind: output, shape index: {}]
  %s4 = sld [smem:[#allocation0]]
  $region14: #{tpu_custom_call.1} parent=0
    _
  %s6 = ssub.s32 1, %s4
  %s7 = scalar_select 0, %s6, %s4
  %s9 = sshll.u32 %s0, 4
  %s10 = int_to_ptr.vmem [resolvable:$true] %s9
  %12 = dma.vmem_to_smem %s10, 16, [#allocation3], [#allocation2]
  %13 = sst [smem:[#allocation4]] %s1
  %15 = dma.done [#allocation2], 16
  %16 = sfence
  $region1: #{tpu_custom_call.1} parent=0
    #allocation5 [shape = 'u8[4096]{0}', space=vmem, size = 0x1000, scoped, tag = 'output window, operand 0, single buffered']
    #allocation6 [shape = 's32[1]{0}', space=sflag, size = 0x4, scoped, tag = 'scoped memory for tpu_custom_call.1']
    %17 = vsyncpa [#allocation6], 0
    // Predicated region
    $region2: #{tpu_custom_call.1} parent=1 // pred_check
      _
    $region3: #{tpu_custom_call.1} parent=1 // pred_check_branch
      %19 = sbr.rel (0) target = $region5
    $region4: #{tpu_custom_call.1} parent=1 // pred_region
      _
    $region5: #{tpu_custom_call.1} parent=1 // pred_fallthru
      _
    %s20 = smul.u32 0, 8
    %s21 = sadd.s32 %s20, 0
    %s22 = smul.u32 %s21, 2
    %s23 = sld [smem:[#allocation3 + %s22]]
    %p24 = scmp.gt.s32.totalorder %s23, 0
    %s25 = scalar_select %p24, %s23, 0
    %p26 = scmp.lt.s32.totalorder %s25, 127
    %s27 = scalar_select %p26, %s25, 127
    %s28 = scalar_lea.vmem %s2, %s27
    %v29 = vld [vmem:[%s28] sm:$0x1]
    %s30 = sadd.s32 %s22, 1
    %s31 = sld [smem:[#allocation3 + %s30]]
    %p32 = scmp.gt.s32.totalorder %s31, 0
    %s33 = scalar_select %p32, %s31, 0
    %p34 = scmp.lt.s32.totalorder %s33, 127
    %s35 = scalar_select %p34, %s33, 127
    %s36 = scalar_lea.vmem %s2, %s35
    %v37 = vld [vmem:[%s36] sm:$0x1]
    %39 = vrot.lane.b32.xlu0 %v37, 64
    %v40 = vpop.permute.xlu0 %39
    %vm42 = vcmask 523264
    %v43 = vsel %vm42, %v29, %v40
    %s44 = sadd.s32 %s22, 2
    %s45 = sld [smem:[#allocation3 + %s44]]
    %p46 = scmp.gt.s32.totalorder %s45, 0
    %s47 = scalar_select %p46, %s45, 0
    %p48 = scmp.lt.s32.totalorder %s47, 127
    %s49 = scalar_select %p48, %s47, 127
    %s50 = scalar_lea.vmem %s2, %s49
    %v51 = vld [vmem:[%s50] sm:$0x1]
    %s52 = sadd.s32 %s22, 3
    %s53 = sld [smem:[#allocation3 + %s52]]
    %p54 = scmp.gt.s32.totalorder %s53, 0
    %s55 = scalar_select %p54, %s53, 0
    %p56 = scmp.lt.s32.totalorder %s55, 127
    %s57 = scalar_select %p56, %s55, 127
    %s58 = scalar_lea.vmem %s2, %s57
    %v59 = vld [vmem:[%s58] sm:$0x1]
    %61 = vrot.lane.b32.xlu0 %v59, 64
    %v62 = vpop.permute.xlu0 %61
    %v64 = vsel %vm42, %v51, %v62
    %s65 = sadd.s32 %s22, 4
    %s66 = sld [smem:[#allocation3 + %s65]]
    %p67 = scmp.gt.s32.totalorder %s66, 0
    %s68 = scalar_select %p67, %s66, 0
    %p69 = scmp.lt.s32.totalorder %s68, 127
    %s70 = scalar_select %p69, %s68, 127
    %s71 = scalar_lea.vmem %s2, %s70
    %v72 = vld [vmem:[%s71] sm:$0x1]
    %s73 = sadd.s32 %s22, 5
    %s74 = sld [smem:[#allocation3 + %s73]]
    %p75 = scmp.gt.s32.totalorder %s74, 0
    %s76 = scalar_select %p75, %s74, 0
    %p77 = scmp.lt.s32.totalorder %s76, 127
    %s78 = scalar_select %p77, %s76, 127
    %s79 = scalar_lea.vmem %s2, %s78
    %v80 = vld [vmem:[%s79] sm:$0x1]
    %82 = vrot.lane.b32.xlu0 %v80, 64
    %v83 = vpop.permute.xlu0 %82
    %v85 = vsel %vm42, %v72, %v83
    %s86 = sadd.s32 %s22, 6
    %s87 = sld [smem:[#allocation3 + %s86]]
    %p88 = scmp.gt.s32.totalorder %s87, 0
    %s89 = scalar_select %p88, %s87, 0
    %p90 = scmp.lt.s32.totalorder %s89, 127
    %s91 = scalar_select %p90, %s89, 127
    %s92 = scalar_lea.vmem %s2, %s91
    %v93 = vld [vmem:[%s92] sm:$0x1]
    %s94 = sadd.s32 %s22, 7
    %s95 = sld [smem:[#allocation3 + %s94]]
    %p96 = scmp.gt.s32.totalorder %s95, 0
    %s97 = scalar_select %p96, %s95, 0
    %p98 = scmp.lt.s32.totalorder %s97, 127
    %s99 = scalar_select %p98, %s97, 127
    %s100 = scalar_lea.vmem %s2, %s99
    %v101 = vld [vmem:[%s100] sm:$0x1]
    %103 = vrot.lane.b32.xlu0 %v101, 64
    %v104 = vpop.permute.xlu0 %103
    %v106 = vsel %vm42, %v93, %v104
    %s107 = sadd.s32 %s22, 8
    %s108 = sld [smem:[#allocation3 + %s107]]
    %p109 = scmp.gt.s32.totalorder %s108, 0
    %s110 = scalar_select %p109, %s108, 0
    %p111 = scmp.lt.s32.totalorder %s110, 127
    %s112 = scalar_select %p111, %s110, 127
    %s113 = scalar_lea.vmem %s2, %s112
    %v114 = vld [vmem:[%s113] sm:$0x1]
    %s115 = sadd.s32 %s22, 9
    %s116 = sld [smem:[#allocation3 + %s115]]
    %p117 = scmp.gt.s32.totalorder %s116, 0
    %s118 = scalar_select %p117, %s116, 0
    %p119 = scmp.lt.s32.totalorder %s118, 127
    %s120 = scalar_select %p119, %s118, 127
    %s121 = scalar_lea.vmem %s2, %s120
    %v122 = vld [vmem:[%s121] sm:$0x1]
    %124 = vrot.lane.b32.xlu0 %v122, 64
    %v125 = vpop.permute.xlu0 %124
    %v127 = vsel %vm42, %v114, %v125
    %s128 = sadd.s32 %s22, 10
    %s129 = sld [smem:[#allocation3 + %s128]]
    %p130 = scmp.gt.s32.totalorder %s129, 0
    %s131 = scalar_select %p130, %s129, 0
    %p132 = scmp.lt.s32.totalorder %s131, 127
    %s133 = scalar_select %p132, %s131, 127
    %s134 = scalar_lea.vmem %s2, %s133
    %v135 = vld [vmem:[%s134] sm:$0x1]
    %s136 = sadd.s32 %s22, 11
    %s137 = sld [smem:[#allocation3 + %s136]]
    %p138 = scmp.gt.s32.totalorder %s137, 0
    %s139 = scalar_select %p138, %s137, 0
    %p140 = scmp.lt.s32.totalorder %s139, 127
    %s141 = scalar_select %p140, %s139, 127
    %s142 = scalar_lea.vmem %s2, %s141
    %v143 = vld [vmem:[%s142] sm:$0x1]
    %145 = vrot.lane.b32.xlu0 %v143, 64
    %v146 = vpop.permute.xlu0 %145
    %v148 = vsel %vm42, %v135, %v146
    %s149 = sadd.s32 %s22, 12
    %s150 = sld [smem:[#allocation3 + %s149]]
    %p151 = scmp.gt.s32.totalorder %s150, 0
    %s152 = scalar_select %p151, %s150, 0
    %p153 = scmp.lt.s32.totalorder %s152, 127
    %s154 = scalar_select %p153, %s152, 127
    %s155 = scalar_lea.vmem %s2, %s154
    %v156 = vld [vmem:[%s155] sm:$0x1]
    %s157 = sadd.s32 %s22, 13
    %s158 = sld [smem:[#allocation3 + %s157]]
    %p159 = scmp.gt.s32.totalorder %s158, 0
    %s160 = scalar_select %p159, %s158, 0
    %p161 = scmp.lt.s32.totalorder %s160, 127
    %s162 = scalar_select %p161, %s160, 127
    %s163 = scalar_lea.vmem %s2, %s162
    %v164 = vld [vmem:[%s163] sm:$0x1]
    %166 = vrot.lane.b32.xlu0 %v164, 64
    %v167 = vpop.permute.xlu0 %166
    %v169 = vsel %vm42, %v156, %v167
    %s170 = sadd.s32 %s22, 14
    %s171 = sld [smem:[#allocation3 + %s170]]
    %p172 = scmp.gt.s32.totalorder %s171, 0
    %s173 = scalar_select %p172, %s171, 0
    %p174 = scmp.lt.s32.totalorder %s173, 127
    %s175 = scalar_select %p174, %s173, 127
    %s176 = scalar_lea.vmem %s2, %s175
    %v177 = vld [vmem:[%s176] sm:$0x1]
    %s178 = sadd.s32 %s22, 15
    %s179 = sld [smem:[#allocation3 + %s178]]
    %p180 = scmp.gt.s32.totalorder %s179, 0
    %s181 = scalar_select %p180, %s179, 0
    %p182 = scmp.lt.s32.totalorder %s181, 127
    %s183 = scalar_select %p182, %s181, 127
    %s184 = scalar_lea.vmem %s2, %s183
    %v185 = vld [vmem:[%s184] sm:$0x1]
    %187 = vrot.lane.b32.xlu0 %v185, 64
    %v188 = vpop.permute.xlu0 %187
    %v190 = vsel %vm42, %v177, %v188
    %v192 = vrot.slane %v64, 7
    %v195 = vrot.slane %v85, 6
    %v198 = vrot.slane %v106, 5
    %v201 = vrot.slane %v127, 4
    %v204 = vrot.slane %v148, 3
    %v207 = vrot.slane %v169, 2
    %v210 = vrot.slane %v190, 1
    %vm212 = vcmask 1040384
    %v213 = vsel %vm212, %v43, %v192
    %vm214 = vcmask 1041408
    %v215 = vsel %vm214, %v213, %v195
    %vm216 = vcmask 1042432
    %v217 = vsel %vm216, %v215, %v198
    %vm218 = vcmask 1043456
    %v219 = vsel %vm218, %v217, %v201
    %vm220 = vcmask 1044480
    %v221 = vsel %vm220, %v219, %v204
    %vm222 = vcmask 1045504
    %v223 = vsel %vm222, %v221, %v207
    %vm224 = vcmask 1046528
    %v225 = vsel %vm224, %v223, %v210
    %226 = vst [vmem:[#allocation5] sm:$0xff] %v225
    // Predicated region
    $region6: #{tpu_custom_call.1} parent=1 // pred_check
      _
    $region7: #{tpu_custom_call.1} parent=1 // pred_check_branch
      %228 = sbr.rel (0) target = $region9
    $region8: #{tpu_custom_call.1} parent=1 // pred_region
      %230 = vsyncadd [#allocation6], 0
      %s232 = sshll.u32 [#allocation5], 4
      %s233 = int_to_ptr.vmem [resolvable:$true] %s232
      %s234 = sshll.u32 %s3, 4
      %s235 = int_to_ptr.hbm [resolvable:$true] %s234
      %237 = dma.vmem_to_hbm [thread:$0]  %s233, 128, %s235, [#allocation6]
    $region9: #{tpu_custom_call.1} parent=1 // pred_fallthru
      _
    // Predicated region
    $region10: #{tpu_custom_call.1} parent=1 // pred_check
      _
    $region11: #{tpu_custom_call.1} parent=1 // pred_check_branch
      %239 = sbr.rel (0) target = $region13
    $region12: #{tpu_custom_call.1} parent=1 // pred_region
      %241 = dma.done [#allocation6], 128
    $region13: #{tpu_custom_call.1} parent=1 // pred_fallthru
      _
    %242 = vsyncpa [#allocation6], 1

</llo_original>
